<compile_context>
chip_gen: v5e
topology: v5e:2x2
jax: 0.10.0
libtpu: 0.0.40
codegen_flags: <defaults>
</compile_context>

<pallas_src>
import functools

import jax
import jax.numpy as jnp
from jax import lax
from jax.experimental import pallas as pl
from jax.experimental.pallas import tpu as pltpu

_LANE = 128
_SUBLANE = 8


def _round_up(x, m):
    return (x + m - 1) // m * m


def _mlp_fused_kernel(*refs, num_layers):
    # refs = (x_ref, w0_ref, b0_ref, w1_ref, b1_ref, ..., out_ref)
    x_ref = refs[0]
    out_ref = refs[-1]
    wb = refs[1:-1]

    y = x_ref[...]  # [tm, K0_pad] f32, resident in VMEM
    for i in range(num_layers):
        w = wb[2 * i][...]        # [Ki_pad, Ni_pad]
        b = wb[2 * i + 1][...]    # [1, Ni_pad], loaded once per tile
        y = jnp.dot(y, w,
                    preferred_element_type=jnp.float32,
                    precision=lax.Precision.HIGHEST) + b
        if i < num_layers - 1:
            y = jnp.maximum(y, 0.0)
    out_ref[...] = y.astype(out_ref.dtype)


def mlp_forward(x, params):
    """x: [..., input_dim] -> [..., output_dim]; ReLU between layers, none after last."""
    orig_shape = x.shape
    in_dim = orig_shape[-1]
    out_dim = params[-1][0].shape[1]
    num_layers = len(params)

    x2d = x.reshape(-1, in_dim).astype(jnp.float32)
    M = x2d.shape[0]

    # --- M tiling (sublane aligned, grid over rows) ---
    tm = _LANE if M >= _LANE else _round_up(M, _SUBLANE)
    M_pad = _round_up(M, tm)

    # --- lane-pad feature dims; zero padding is exact for matmul+bias+ReLU ---
    in_dims = [w.shape[0] for (w, _) in params]
    out_dims = [w.shape[1] for (w, _) in params]
    in_dims_p = [_round_up(d, _LANE) for d in in_dims]
    out_dims_p = [_round_up(d, _LANE) for d in out_dims]
    N_pad = out_dims_p[-1]

    x_p = jnp.pad(x2d, ((0, M_pad - M), (0, in_dims_p[0] - in_dim)))

    flat_inputs = [x_p]
    for (w, b), kp, np_ in zip(params, in_dims_p, out_dims_p):
        w_p = jnp.pad(w.astype(jnp.float32),
                      ((0, kp - w.shape[0]), (0, np_ - w.shape[1])))
        b_p = jnp.pad(b.astype(jnp.float32), ((0, 0), (0, np_ - b.shape[1])))
        flat_inputs += [w_p, b_p]

    grid = (M_pad // tm,)
    in_specs = [pl.BlockSpec((tm, in_dims_p[0]), lambda i: (i, 0))]
    for kp, np_ in zip(in_dims_p, out_dims_p):
        in_specs.append(pl.BlockSpec((kp, np_), lambda i: (0, 0)))   # weights pinned
        in_specs.append(pl.BlockSpec((1, np_), lambda i: (0, 0)))    # bias pinned
    out_specs = pl.BlockSpec((tm, N_pad), lambda i: (i, 0))

    flops = 2 * M_pad * sum(kp * np_ for kp, np_ in zip(in_dims_p, out_dims_p))
    bytes_accessed = 4 * (M_pad * in_dims_p[0] + M_pad * N_pad
                          + sum(kp * np_ + np_ for kp, np_ in zip(in_dims_p, out_dims_p)))

    kernel = functools.partial(_mlp_fused_kernel, num_layers=num_layers)
    out_p = pl.pallas_call(
        kernel,
        out_shape=jax.ShapeDtypeStruct((M_pad, N_pad), jnp.float32),
        grid=grid,
        in_specs=in_specs,
        out_specs=out_specs,
        compiler_params=pltpu.CompilerParams(
            dimension_semantics=("parallel",)),
        cost_estimate=pl.CostEstimate(flops=flops, transcendentals=0,
                                      bytes_accessed=bytes_accessed),
    )(*flat_inputs)

    out = out_p[:M, :out_dim]
    return out.reshape(*orig_shape[:-1], out_dim)


def init_mlp_params(key, input_dim, hidden_dim, output_dim, num_layers):
    """Deterministic init matching nn.Linear's U(-1/sqrt(fan_in), 1/sqrt(fan_in))."""
    h = [hidden_dim] * (num_layers - 1)
    dims_in = [input_dim] + h
    dims_out = h + [output_dim]
    params = []
    for n_in, n_out in zip(dims_in, dims_out):
        key, kw, kb = jax.random.split(key, 3)
        bound = 1.0 / jnp.sqrt(jnp.float32(n_in))
        # stored pre-transposed: [in, out]
        w = jax.random.uniform(kw, (n_in, n_out), jnp.float32, -bound, bound)
        b = jax.random.uniform(kb, (1, n_out), jnp.float32, -bound, bound)
        params.append((w, b))
    return params


def mlp_reference(x, params):
    x2d = x.reshape(-1, x.shape[-1])
    for i, (w, b) in enumerate(params):
        x2d = x2d @ w + b
        if i < len(params) - 1:
            x2d = jnp.maximum(x2d, 0.0)
    return x2d.reshape(*x.shape[:-1], params[-1][0].shape[1])


if __name__ == "__main__":
    key = jax.random.PRNGKey(0)
    k_x, k_p = jax.random.split(key)

    batch, seq = 2, 8
    input_dim, hidden_dim, output_dim, num_layers = 32, 64, 16, 3

    x = jax.random.normal(k_x, (batch, seq, input_dim), jnp.float32)
    params = init_mlp_params(k_p, input_dim, hidden_dim, output_dim, num_layers)

    out = mlp_forward(x, params)
    out = jax.block_until_ready(out)

    ref = mlp_reference(x, params)
    assert out.shape == (batch, seq, output_dim), out.shape
    assert jnp.allclose(out, ref, atol=1e-5, rtol=1e-5), "mismatch vs reference"

    print("KERNEL_OK")
</pallas_src>

<mosaic_0001>
module attributes {stable_mosaic.version = 11 : i64} {
  func.func @_mlp_fused_kernel(%arg0: i32, %arg1: memref<16x128xf32, #tpu.memory_space<vmem>>, %arg2: memref<128x128xf32, #tpu.memory_space<vmem>>, %arg3: memref<1x128xf32, #tpu.memory_space<vmem>>, %arg4: memref<128x128xf32, #tpu.memory_space<vmem>>, %arg5: memref<1x128xf32, #tpu.memory_space<vmem>>, %arg6: memref<128x128xf32, #tpu.memory_space<vmem>>, %arg7: memref<1x128xf32, #tpu.memory_space<vmem>>, %arg8: memref<16x128xf32, #tpu.memory_space<vmem>>) attributes {dimension_semantics = [#tpu.dimension_semantics<parallel>], iteration_bounds = array<i64: 1>, scalar_prefetch = 0 : i64, scratch_operands = 0 : i64, tpu.core_type = #tpu.core_type<tc>, window_params = [{transform_indices = @transform_0, window_bounds = array<i64: 16, 128>}, {pipeline_mode = #tpu.pipeline_mode<synchronous>, transform_indices = @transform_1, window_bounds = array<i64: 128, 128>}, {pipeline_mode = #tpu.pipeline_mode<synchronous>, transform_indices = @transform_2, window_bounds = array<i64: 1, 128>}, {pipeline_mode = #tpu.pipeline_mode<synchronous>, transform_indices = @transform_3, window_bounds = array<i64: 128, 128>}, {pipeline_mode = #tpu.pipeline_mode<synchronous>, transform_indices = @transform_4, window_bounds = array<i64: 1, 128>}, {pipeline_mode = #tpu.pipeline_mode<synchronous>, transform_indices = @transform_5, window_bounds = array<i64: 128, 128>}, {pipeline_mode = #tpu.pipeline_mode<synchronous>, transform_indices = @transform_6, window_bounds = array<i64: 1, 128>}, {transform_indices = @transform_7, window_bounds = array<i64: 16, 128>}]} {
    %c0 = arith.constant 0 : index
    %c0_0 = arith.constant 0 : index
    %0 = vector.load %arg1[%c0, %c0_0] : memref<16x128xf32, #tpu.memory_space<vmem>>, vector<16x128xf32>
    %c0_1 = arith.constant 0 : index
    %c0_2 = arith.constant 0 : index
    %1 = vector.load %arg2[%c0_1, %c0_2] : memref<128x128xf32, #tpu.memory_space<vmem>>, vector<128x128xf32>
    %c0_3 = arith.constant 0 : index
    %c0_4 = arith.constant 0 : index
    %2 = vector.load %arg3[%c0_3, %c0_4] : memref<1x128xf32, #tpu.memory_space<vmem>>, vector<1x128xf32>
    %cst = arith.constant dense<0.000000e+00> : vector<16x128xf32>
    %3 = tpu.matmul %0, %1, %cst {dimension_numbers = #tpu.dot_dimension_numbers<[1], [0], [0], [1], [0, 0, 1, 1], [], []>, precision = #tpu.contract_precision<fp32>} : vector<16x128xf32>, vector<128x128xf32>, vector<16x128xf32> -> vector<16x128xf32>
    %4 = vector.broadcast %2 : vector<1x128xf32> to vector<16x128xf32>
    %5 = arith.addf %3, %4 : vector<16x128xf32>
    %cst_5 = arith.constant 0.000000e+00 : f32
    %6 = vector.broadcast %cst_5 : f32 to vector<16x128xf32>
    %7 = arith.maximumf %5, %6 : vector<16x128xf32>
    %c0_6 = arith.constant 0 : index
    %c0_7 = arith.constant 0 : index
    %8 = vector.load %arg4[%c0_6, %c0_7] : memref<128x128xf32, #tpu.memory_space<vmem>>, vector<128x128xf32>
    %c0_8 = arith.constant 0 : index
    %c0_9 = arith.constant 0 : index
    %9 = vector.load %arg5[%c0_8, %c0_9] : memref<1x128xf32, #tpu.memory_space<vmem>>, vector<1x128xf32>
    %cst_10 = arith.constant dense<0.000000e+00> : vector<16x128xf32>
    %10 = tpu.matmul %7, %8, %cst_10 {dimension_numbers = #tpu.dot_dimension_numbers<[1], [0], [0], [1], [0, 0, 1, 1], [], []>, precision = #tpu.contract_precision<fp32>} : vector<16x128xf32>, vector<128x128xf32>, vector<16x128xf32> -> vector<16x128xf32>
    %11 = vector.broadcast %9 : vector<1x128xf32> to vector<16x128xf32>
    %12 = arith.addf %10, %11 : vector<16x128xf32>
    %cst_11 = arith.constant 0.000000e+00 : f32
    %13 = vector.broadcast %cst_11 : f32 to vector<16x128xf32>
    %14 = arith.maximumf %12, %13 : vector<16x128xf32>
    %c0_12 = arith.constant 0 : index
    %c0_13 = arith.constant 0 : index
    %15 = vector.load %arg6[%c0_12, %c0_13] : memref<128x128xf32, #tpu.memory_space<vmem>>, vector<128x128xf32>
    %c0_14 = arith.constant 0 : index
    %c0_15 = arith.constant 0 : index
    %16 = vector.load %arg7[%c0_14, %c0_15] : memref<1x128xf32, #tpu.memory_space<vmem>>, vector<1x128xf32>
    %cst_16 = arith.constant dense<0.000000e+00> : vector<16x128xf32>
    %17 = tpu.matmul %14, %15, %cst_16 {dimension_numbers = #tpu.dot_dimension_numbers<[1], [0], [0], [1], [0, 0, 1, 1], [], []>, precision = #tpu.contract_precision<fp32>} : vector<16x128xf32>, vector<128x128xf32>, vector<16x128xf32> -> vector<16x128xf32>
    %18 = vector.broadcast %16 : vector<1x128xf32> to vector<16x128xf32>
    %19 = arith.addf %17, %18 : vector<16x128xf32>
    %c0_17 = arith.constant 0 : index
    %c0_18 = arith.constant 0 : index
    %20 = vector.load %arg8[%c0_17, %c0_18] : memref<16x128xf32, #tpu.memory_space<vmem>>, vector<16x128xf32>
    tpu.vector_store %arg8[%c0_17, %c0_18], %19 {strides = array<i32>} : memref<16x128xf32, #tpu.memory_space<vmem>>, vector<16x128xf32>,
    return
  }
  func.func @transform_0(%arg0: i32) -> (i32, i32) {
    %c0_i32 = arith.constant 0 : i32
    %c0_i32_0 = arith.constant 0 : i32
    return %arg0, %c0_i32 : i32, i32
  }
  func.func @transform_1(%arg0: i32) -> (i32, i32) {
    %c0_i32 = arith.constant 0 : i32
    %c0_i32_0 = arith.constant 0 : i32
    %c0_i32_1 = arith.constant 0 : i32
    return %c0_i32, %c0_i32_0 : i32, i32
  }
  func.func @transform_2(%arg0: i32) -> (i32, i32) {
    %c0_i32 = arith.constant 0 : i32
    %c0_i32_0 = arith.constant 0 : i32
    %c0_i32_1 = arith.constant 0 : i32
    return %c0_i32, %c0_i32_0 : i32, i32
  }
  func.func @transform_3(%arg0: i32) -> (i32, i32) {
    %c0_i32 = arith.constant 0 : i32
    %c0_i32_0 = arith.constant 0 : i32
    %c0_i32_1 = arith.constant 0 : i32
    return %c0_i32, %c0_i32_0 : i32, i32
  }
  func.func @transform_4(%arg0: i32) -> (i32, i32) {
    %c0_i32 = arith.constant 0 : i32
    %c0_i32_0 = arith.constant 0 : i32
    %c0_i32_1 = arith.constant 0 : i32
    return %c0_i32, %c0_i32_0 : i32, i32
  }
  func.func @transform_5(%arg0: i32) -> (i32, i32) {
    %c0_i32 = arith.constant 0 : i32
    %c0_i32_0 = arith.constant 0 : i32
    %c0_i32_1 = arith.constant 0 : i32
    return %c0_i32, %c0_i32_0 : i32, i32
  }
  func.func @transform_6(%arg0: i32) -> (i32, i32) {
    %c0_i32 = arith.constant 0 : i32
    %c0_i32_0 = arith.constant 0 : i32
    %c0_i32_1 = arith.constant 0 : i32
    return %c0_i32, %c0_i32_0 : i32, i32
  }
  func.func @transform_7(%arg0: i32) -> (i32, i32) {
    %c0_i32 = arith.constant 0 : i32
    %c0_i32_0 = arith.constant 0 : i32
    return %arg0, %c0_i32 : i32, i32
  }
}

</mosaic_0001>

<llo_original>
// kernel: tpu_custom_call.1
$region0: #{tpu_custom_call.1}
  #allocation0 [shape = 'u32[]', space=smem, size = 0x4, offset = 0x4, fixed_abs, tag = 'smem constant byte address 0x4 - core index']
  #allocation1 [shape = 'u32[72,128]{1,0:T(1,128)}', space=vmem, size = 0x9000, scoped, tag = 'internal scratch']
  %s0 = inlined_call_operand.hbm [shape: f32[16,128], index: 0, kind: input, shape index: {}]
  %s1 = inlined_call_operand.hbm [shape: f32[128,128], index: 1, kind: input, shape index: {}]
  %s2 = inlined_call_operand.vmem [shape: f32[1,128], index: 2, kind: input, shape index: {}]
  %s3 = inlined_call_operand.hbm [shape: f32[128,128], index: 3, kind: input, shape index: {}]
  %s4 = inlined_call_operand.vmem [shape: f32[1,128], index: 4, kind: input, shape index: {}]
  %s5 = inlined_call_operand.hbm [shape: f32[128,128], index: 5, kind: input, shape index: {}]
  %s6 = inlined_call_operand.vmem [shape: f32[1,128], index: 6, kind: input, shape index: {}]
  %s7 = inlined_call_operand.hbm [shape: f32[16,128], index: 7, kind: output, shape index: {}]
  %s8 = sld [smem:[#allocation0]]
  $region54: #{tpu_custom_call.1} parent=0
    _
  %s10 = ssub.s32 1, %s8
  %s11 = scalar_select 0, %s10, %s8
  $region1: #{tpu_custom_call.1} parent=0
    #allocation2 [shape = 'u8[8192]{0}', space=vmem, size = 0x2000, scoped, tag = 'input window, operand 0, single buffered']
    #allocation3 [shape = 's32[1]{0}', space=sflag, size = 0x4, scoped, tag = 'scoped memory for tpu_custom_call.1']
    #allocation4 [shape = 's32[1]{0}', space=sflag, size = 0x4, scoped, tag = 'scoped memory for tpu_custom_call.1']
    #allocation5 [shape = 'u8[65536]{0}', space=vmem, size = 0x10000, scoped, tag = 'input window, operand 1, single buffered']
    #allocation6 [shape = 's32[1]{0}', space=sflag, size = 0x4, scoped, tag = 'scoped memory for tpu_custom_call.1']
    #allocation7 [shape = 'u8[65536]{0}', space=vmem, size = 0x10000, scoped, tag = 'input window, operand 3, single buffered']
    #allocation8 [shape = 'u8[65536]{0}', space=vmem, size = 0x10000, scoped, tag = 'input window, operand 5, single buffered']
    #allocation9 [shape = 's32[1]{0}', space=sflag, size = 0x4, scoped, tag = 'scoped memory for tpu_custom_call.1']
    #allocation10 [shape = 'u8[8192]{0}', space=vmem, size = 0x2000, scoped, tag = 'output window, operand 0, single buffered']
    %12 = vsyncpa [#allocation3], 0
    %13 = vsyncpa [#allocation6], 0
    %14 = vsyncpa [#allocation9], 0
    %15 = vsyncpa [#allocation4], 0
    // Predicated region
    $region2: #{tpu_custom_call.1} parent=1 // pred_check
      _
    $region3: #{tpu_custom_call.1} parent=1 // pred_check_branch
      %17 = sbr.rel (0) target = $region5
    $region4: #{tpu_custom_call.1} parent=1 // pred_region
      %19 = vsyncadd [#allocation3], 0
      %s20 = sshll.u32 %s0, 4
      %s21 = int_to_ptr.hbm [resolvable:$true] %s20
      %s22 = sshll.u32 [#allocation2], 4
      %s23 = int_to_ptr.vmem [resolvable:$true] %s22
      %28 = dma.hbm_to_vmem [thread:$0]  %s21, 256, %s23, [#allocation3], 128, 128, 8
    $region5: #{tpu_custom_call.1} parent=1 // pred_fallthru
      _
    // Predicated region
    $region6: #{tpu_custom_call.1} parent=1 // pred_check
      _
    $region7: #{tpu_custom_call.1} parent=1 // pred_check_branch
      %30 = sbr.rel (0) target = $region9
    $region8: #{tpu_custom_call.1} parent=1 // pred_region
      %32 = vsyncadd [#allocation6], 0
      %s33 = sshll.u32 %s1, 4
      %s34 = int_to_ptr.hbm [resolvable:$true] %s33
      %s35 = sshll.u32 [#allocation5], 4
      %s36 = int_to_ptr.vmem [resolvable:$true] %s35
      %41 = dma.hbm_to_vmem [thread:$0]  %s34, 2048, %s36, [#allocation6], 128, 128, 8
    $region9: #{tpu_custom_call.1} parent=1 // pred_fallthru
      _
    // Predicated region
    $region10: #{tpu_custom_call.1} parent=1 // pred_check
      _
    $region11: #{tpu_custom_call.1} parent=1 // pred_check_branch
      %43 = sbr.rel (0) target = $region13
    $region12: #{tpu_custom_call.1} parent=1 // pred_region
      _
    $region13: #{tpu_custom_call.1} parent=1 // pred_fallthru
      _
    // Predicated region
    $region14: #{tpu_custom_call.1} parent=1 // pred_check
      _
    $region15: #{tpu_custom_call.1} parent=1 // pred_check_branch
      %45 = sbr.rel (0) target = $region17
    $region16: #{tpu_custom_call.1} parent=1 // pred_region
      %47 = vsyncadd [#allocation6], 0
      %s48 = sshll.u32 %s3, 4
      %s49 = int_to_ptr.hbm [resolvable:$true] %s48
      %s50 = sshll.u32 [#allocation7], 4
      %s51 = int_to_ptr.vmem [resolvable:$true] %s50
      %56 = dma.hbm_to_vmem [thread:$0]  %s49, 2048, %s51, [#allocation6], 128, 128, 8
    $region17: #{tpu_custom_call.1} parent=1 // pred_fallthru
      _
    // Predicated region
    $region18: #{tpu_custom_call.1} parent=1 // pred_check
      _
    $region19: #{tpu_custom_call.1} parent=1 // pred_check_branch
      %58 = sbr.rel (0) target = $region21
    $region20: #{tpu_custom_call.1} parent=1 // pred_region
      _
    $region21: #{tpu_custom_call.1} parent=1 // pred_fallthru
      _
    // Predicated region
    $region22: #{tpu_custom_call.1} parent=1 // pred_check
      _
    $region23: #{tpu_custom_call.1} parent=1 // pred_check_branch
      %60 = sbr.rel (0) target = $region25
    $region24: #{tpu_custom_call.1} parent=1 // pred_region
      %62 = vsyncadd [#allocation9], 0
      %s63 = sshll.u32 %s5, 4
      %s64 = int_to_ptr.hbm [resolvable:$true] %s63
      %s65 = sshll.u32 [#allocation8], 4
      %s66 = int_to_ptr.vmem [resolvable:$true] %s65
      %71 = dma.hbm_to_vmem [thread:$0]  %s64, 2048, %s66, [#allocation9], 128, 128, 8
    $region25: #{tpu_custom_call.1} parent=1 // pred_fallthru
      _
    // Predicated region
    $region26: #{tpu_custom_call.1} parent=1 // pred_check
      _
    $region27: #{tpu_custom_call.1} parent=1 // pred_check_branch
      %73 = sbr.rel (0) target = $region29
    $region28: #{tpu_custom_call.1} parent=1 // pred_region
      _
    $region29: #{tpu_custom_call.1} parent=1 // pred_fallthru
      _
    // Predicated region
    $region30: #{tpu_custom_call.1} parent=1 // pred_check
      _
    $region31: #{tpu_custom_call.1} parent=1 // pred_check_branch
      %75 = sbr.rel (0) target = $region33
    $region32: #{tpu_custom_call.1} parent=1 // pred_region
      %77 = dma.done [#allocation3], 256
    $region33: #{tpu_custom_call.1} parent=1 // pred_fallthru
      _
    // Predicated region
    $region34: #{tpu_custom_call.1} parent=1 // pred_check
      _
    $region35: #{tpu_custom_call.1} parent=1 // pred_check_branch
      %79 = sbr.rel (0) target = $region37
    $region36: #{tpu_custom_call.1} parent=1 // pred_region
      %81 = dma.done [#allocation6], 2048
    $region37: #{tpu_custom_call.1} parent=1 // pred_fallthru
      _
    // Predicated region
    $region38: #{tpu_custom_call.1} parent=1 // pred_check
      _
    $region39: #{tpu_custom_call.1} parent=1 // pred_check_branch
      %83 = sbr.rel (0) target = $region41
    $region40: #{tpu_custom_call.1} parent=1 // pred_region
      %85 = dma.done [#allocation6], 2048
    $region41: #{tpu_custom_call.1} parent=1 // pred_fallthru
      _
    // Predicated region
    $region42: #{tpu_custom_call.1} parent=1 // pred_check
      _
    $region43: #{tpu_custom_call.1} parent=1 // pred_check_branch
      %87 = sbr.rel (0) target = $region45
    $region44: #{tpu_custom_call.1} parent=1 // pred_region
      %89 = dma.done [#allocation9], 2048
    $region45: #{tpu_custom_call.1} parent=1 // pred_fallthru
      _
    %v90 = vld [vmem:[#allocation2] sm:$0xff]
    %v91 = vld [vmem:[#allocation2 + $0x8] sm:$0xff]
    %v92 = vld [vmem:[#allocation5] sm:$0xff]
    %v93 = vld [vmem:[#allocation5 + $0x8] sm:$0xff]
    %v94 = vld [vmem:[#allocation5 + $0x10] sm:$0xff]
    %v95 = vld [vmem:[#allocation5 + $0x18] sm:$0xff]
    %v96 = vld [vmem:[#allocation5 + $0x20] sm:$0xff]
    %v97 = vld [vmem:[#allocation5 + $0x28] sm:$0xff]
    %v98 = vld [vmem:[#allocation5 + $0x30] sm:$0xff]
    %v99 = vld [vmem:[#allocation5 + $0x38] sm:$0xff]
    %v100 = vld [vmem:[#allocation5 + $0x40] sm:$0xff]
    %v101 = vld [vmem:[#allocation5 + $0x48] sm:$0xff]
    %v102 = vld [vmem:[#allocation5 + $0x50] sm:$0xff]
    %v103 = vld [vmem:[#allocation5 + $0x58] sm:$0xff]
    %v104 = vld [vmem:[#allocation5 + $0x60] sm:$0xff]
    %v105 = vld [vmem:[#allocation5 + $0x68] sm:$0xff]
    %v106 = vld [vmem:[#allocation5 + $0x70] sm:$0xff]
    %v107 = vld [vmem:[#allocation5 + $0x78] sm:$0xff]
    %v108 = vld [vmem:[%s2] sm:$0x1]
    %v110 = vperm.slane %v108, 0
    %v112 = vand.u32 %v107, 4294901760
    %113 = vmatpush.msra.mxu0 %v112
    %v114 = vand.u32 %v106, 4294901760
    %115 = vmatpush.msra.mxu0 %v114
    %v116 = vand.u32 %v105, 4294901760
    %117 = vmatpush.msra.mxu0 %v116
    %v118 = vand.u32 %v104, 4294901760
    %119 = vmatpush.msra.mxu0 %v118
    %v120 = vand.u32 %v103, 4294901760
    %121 = vmatpush.msra.mxu0 %v120
    %v122 = vand.u32 %v102, 4294901760
    %123 = vmatpush.msra.mxu0 %v122
    %v124 = vand.u32 %v101, 4294901760
    %125 = vmatpush.msra.mxu0 %v124
    %v126 = vand.u32 %v100, 4294901760
    %127 = vmatpush.msra.mxu0 %v126
    %v128 = vand.u32 %v99, 4294901760
    %129 = vmatpush.msra.mxu0 %v128
    %v130 = vand.u32 %v98, 4294901760
    %131 = vmatpush.msra.mxu0 %v130
    %v132 = vand.u32 %v97, 4294901760
    %133 = vmatpush.msra.mxu0 %v132
    %v134 = vand.u32 %v96, 4294901760
    %135 = vmatpush.msra.mxu0 %v134
    %v136 = vand.u32 %v95, 4294901760
    %137 = vmatpush.msra.mxu0 %v136
    %v138 = vand.u32 %v94, 4294901760
    %139 = vmatpush.msra.mxu0 %v138
    %v140 = vand.u32 %v93, 4294901760
    %141 = vmatpush.msra.mxu0 %v140
    %v142 = vand.u32 %v92, 4294901760
    %143 = vmatpush.msra.mxu0 %v142
    %v144 = vand.u32 %v90, 4294901760
    %v145 = vsub.f32 %v90, %v144
    %v146 = vand.u32 %v145, 4294901760
    %v147 = vsub.f32 %v145, %v146
    %v148 = vand.u32 %v147, 4294901760
    %149 = vmatmul.f32.gmra.mxu0 %v148
    %v150 = vpop.f32.mrf.mxu0
    %v151 = vadd.f32 %v110, %v150
    %v152 = vand.u32 %v91, 4294901760
    %v153 = vsub.f32 %v91, %v152
    %v154 = vand.u32 %v153, 4294901760
    %v155 = vsub.f32 %v153, %v154
    %v156 = vand.u32 %v155, 4294901760
    %157 = vmatmul.f32.gmra.mxu0 %v156
    %v158 = vpop.f32.mrf.mxu0
    %v159 = vadd.f32 %v110, %v158
    %160 = vdwg.mxu0
    %v161 = vand.u32 %v107, 4294901760
    %v162 = vsub.f32 %v107, %v161
    %v163 = vand.u32 %v162, 4294901760
    %v164 = vsub.f32 %v162, %v163
    %v165 = vand.u32 %v164, 4294901760
    %166 = vmatpush.msra.mxu0 %v165
    %v167 = vand.u32 %v106, 4294901760
    %v168 = vsub.f32 %v106, %v167
    %v169 = vand.u32 %v168, 4294901760
    %v170 = vsub.f32 %v168, %v169
    %v171 = vand.u32 %v170, 4294901760
    %172 = vmatpush.msra.mxu0 %v171
    %v173 = vand.u32 %v105, 4294901760
    %v174 = vsub.f32 %v105, %v173
    %v175 = vand.u32 %v174, 4294901760
    %v176 = vsub.f32 %v174, %v175
    %v177 = vand.u32 %v176, 4294901760
    %178 = vmatpush.msra.mxu0 %v177
    %v179 = vand.u32 %v104, 4294901760
    %v180 = vsub.f32 %v104, %v179
    %v181 = vand.u32 %v180, 4294901760
    %v182 = vsub.f32 %v180, %v181
    %v183 = vand.u32 %v182, 4294901760
    %184 = vmatpush.msra.mxu0 %v183
    %v185 = vand.u32 %v103, 4294901760
    %v186 = vsub.f32 %v103, %v185
    %v187 = vand.u32 %v186, 4294901760
    %v188 = vsub.f32 %v186, %v187
    %v189 = vand.u32 %v188, 4294901760
    %190 = vmatpush.msra.mxu0 %v189
    %v191 = vand.u32 %v102, 4294901760
    %v192 = vsub.f32 %v102, %v191
    %v193 = vand.u32 %v192, 4294901760
    %v194 = vsub.f32 %v192, %v193
    %v195 = vand.u32 %v194, 4294901760
    %196 = vmatpush.msra.mxu0 %v195
    %v197 = vand.u32 %v101, 4294901760
    %v198 = vsub.f32 %v101, %v197
    %v199 = vand.u32 %v198, 4294901760
    %v200 = vsub.f32 %v198, %v199
    %v201 = vand.u32 %v200, 4294901760
    %202 = vmatpush.msra.mxu0 %v201
    %v203 = vand.u32 %v100, 4294901760
    %v204 = vsub.f32 %v100, %v203
    %v205 = vand.u32 %v204, 4294901760
    %v206 = vsub.f32 %v204, %v205
    %v207 = vand.u32 %v206, 4294901760
    %208 = vmatpush.msra.mxu0 %v207
    %v209 = vand.u32 %v99, 4294901760
    %v210 = vsub.f32 %v99, %v209
    %v211 = vand.u32 %v210, 4294901760
    %v212 = vsub.f32 %v210, %v211
    %v213 = vand.u32 %v212, 4294901760
    %214 = vmatpush.msra.mxu0 %v213
    %v215 = vand.u32 %v98, 4294901760
    %v216 = vsub.f32 %v98, %v215
    %v217 = vand.u32 %v216, 4294901760
    %v218 = vsub.f32 %v216, %v217
    %v219 = vand.u32 %v218, 4294901760
    %220 = vmatpush.msra.mxu0 %v219
    %v221 = vand.u32 %v97, 4294901760
    %v222 = vsub.f32 %v97, %v221
    %v223 = vand.u32 %v222, 4294901760
    %v224 = vsub.f32 %v222, %v223
    %v225 = vand.u32 %v224, 4294901760
    %226 = vmatpush.msra.mxu0 %v225
    %v227 = vand.u32 %v96, 4294901760
    %v228 = vsub.f32 %v96, %v227
    %v229 = vand.u32 %v228, 4294901760
    %v230 = vsub.f32 %v228, %v229
    %v231 = vand.u32 %v230, 4294901760
    %232 = vmatpush.msra.mxu0 %v231
    %v233 = vand.u32 %v95, 4294901760
    %v234 = vsub.f32 %v95, %v233
    %v235 = vand.u32 %v234, 4294901760
    %v236 = vsub.f32 %v234, %v235
    %v237 = vand.u32 %v236, 4294901760
    %238 = vmatpush.msra.mxu0 %v237
    %v239 = vand.u32 %v94, 4294901760
    %v240 = vsub.f32 %v94, %v239
    %v241 = vand.u32 %v240, 4294901760
    %v242 = vsub.f32 %v240, %v241
    %v243 = vand.u32 %v242, 4294901760
    %244 = vmatpush.msra.mxu0 %v243
    %v245 = vand.u32 %v93, 4294901760
    %v246 = vsub.f32 %v93, %v245
    %v247 = vand.u32 %v246, 4294901760
    %v248 = vsub.f32 %v246, %v247
    %v249 = vand.u32 %v248, 4294901760
    %250 = vmatpush.msra.mxu0 %v249
    %v251 = vand.u32 %v92, 4294901760
    %v252 = vsub.f32 %v92, %v251
    %v253 = vand.u32 %v252, 4294901760
    %v254 = vsub.f32 %v252, %v253
    %v255 = vand.u32 %v254, 4294901760
    %256 = vmatpush.msra.mxu0 %v255
    %v257 = vand.u32 %v90, 4294901760
    %258 = vmatmul.f32.gmra.mxu0 %v257
    %v259 = vpop.f32.mrf.mxu0
    %v260 = vadd.f32 %v151, %v259
    %v261 = vand.u32 %v91, 4294901760
    %262 = vmatmul.f32.gmra.mxu0 %v261
    %v263 = vpop.f32.mrf.mxu0
    %v264 = vadd.f32 %v159, %v263
    %265 = vdwg.mxu0
    %v266 = vand.u32 %v107, 4294901760
    %v267 = vsub.f32 %v107, %v266
    %268 = vmatpush.msra.mxu0 %v267
    %v269 = vand.u32 %v106, 4294901760
    %v270 = vsub.f32 %v106, %v269
    %271 = vmatpush.msra.mxu0 %v270
    %v272 = vand.u32 %v105, 4294901760
    %v273 = vsub.f32 %v105, %v272
    %274 = vmatpush.msra.mxu0 %v273
    %v275 = vand.u32 %v104, 4294901760
    %v276 = vsub.f32 %v104, %v275
    %277 = vmatpush.msra.mxu0 %v276
    %v278 = vand.u32 %v103, 4294901760
    %v279 = vsub.f32 %v103, %v278
    %280 = vmatpush.msra.mxu0 %v279
    %v281 = vand.u32 %v102, 4294901760
    %v282 = vsub.f32 %v102, %v281
    %283 = vmatpush.msra.mxu0 %v282
    %v284 = vand.u32 %v101, 4294901760
    %v285 = vsub.f32 %v101, %v284
    %286 = vmatpush.msra.mxu0 %v285
    %v287 = vand.u32 %v100, 4294901760
    %v288 = vsub.f32 %v100, %v287
    %289 = vmatpush.msra.mxu0 %v288
    %v290 = vand.u32 %v99, 4294901760
    %v291 = vsub.f32 %v99, %v290
    %292 = vmatpush.msra.mxu0 %v291
    %v293 = vand.u32 %v98, 4294901760
    %v294 = vsub.f32 %v98, %v293
    %295 = vmatpush.msra.mxu0 %v294
    %v296 = vand.u32 %v97, 4294901760
    %v297 = vsub.f32 %v97, %v296
    %298 = vmatpush.msra.mxu0 %v297
    %v299 = vand.u32 %v96, 4294901760
    %v300 = vsub.f32 %v96, %v299
    %301 = vmatpush.msra.mxu0 %v300
    %v302 = vand.u32 %v95, 4294901760
    %v303 = vsub.f32 %v95, %v302
    %304 = vmatpush.msra.mxu0 %v303
    %v305 = vand.u32 %v94, 4294901760
    %v306 = vsub.f32 %v94, %v305
    %307 = vmatpush.msra.mxu0 %v306
    %v308 = vand.u32 %v93, 4294901760
    %v309 = vsub.f32 %v93, %v308
    %310 = vmatpush.msra.mxu0 %v309
    %v311 = vand.u32 %v92, 4294901760
    %v312 = vsub.f32 %v92, %v311
    %313 = vmatpush.msra.mxu0 %v312
    %v314 = vand.u32 %v90, 4294901760
    %v315 = vsub.f32 %v90, %v314
    %316 = vmatmul.f32.gmra.mxu0 %v315
    %v317 = vpop.f32.mrf.mxu0
    %v318 = vadd.f32 %v260, %v317
    %v319 = vand.u32 %v91, 4294901760
    %v320 = vsub.f32 %v91, %v319
    %321 = vmatmul.f32.gmra.mxu0 %v320
    %v322 = vpop.f32.mrf.mxu0
    %v323 = vadd.f32 %v264, %v322
    %324 = vdwg.mxu0
    %v325 = vand.u32 %v107, 4294901760
    %326 = vmatpush.msra.mxu0 %v325
    %v327 = vand.u32 %v106, 4294901760
    %328 = vmatpush.msra.mxu0 %v327
    %v329 = vand.u32 %v105, 4294901760
    %330 = vmatpush.msra.mxu0 %v329
    %v331 = vand.u32 %v104, 4294901760
    %332 = vmatpush.msra.mxu0 %v331
    %v333 = vand.u32 %v103, 4294901760
    %334 = vmatpush.msra.mxu0 %v333
    %v335 = vand.u32 %v102, 4294901760
    %336 = vmatpush.msra.mxu0 %v335
    %v337 = vand.u32 %v101, 4294901760
    %338 = vmatpush.msra.mxu0 %v337
    %v339 = vand.u32 %v100, 4294901760
    %340 = vmatpush.msra.mxu0 %v339
    %v341 = vand.u32 %v99, 4294901760
    %342 = vmatpush.msra.mxu0 %v341
    %v343 = vand.u32 %v98, 4294901760
    %344 = vmatpush.msra.mxu0 %v343
    %v345 = vand.u32 %v97, 4294901760
    %346 = vmatpush.msra.mxu0 %v345
    %v347 = vand.u32 %v96, 4294901760
    %348 = vmatpush.msra.mxu0 %v347
    %v349 = vand.u32 %v95, 4294901760
    %350 = vmatpush.msra.mxu0 %v349
    %v351 = vand.u32 %v94, 4294901760
    %352 = vmatpush.msra.mxu0 %v351
    %v353 = vand.u32 %v93, 4294901760
    %354 = vmatpush.msra.mxu0 %v353
    %v355 = vand.u32 %v92, 4294901760
    %356 = vmatpush.msra.mxu0 %v355
    %v357 = vand.u32 %v90, 4294901760
    %v358 = vsub.f32 %v90, %v357
    %v359 = vand.u32 %v358, 4294901760
    %360 = vmatmul.f32.gmra.mxu0 %v359
    %v361 = vpop.f32.mrf.mxu0
    %v362 = vadd.f32 %v318, %v361
    %v363 = vand.u32 %v91, 4294901760
    %v364 = vsub.f32 %v91, %v363
    %v365 = vand.u32 %v364, 4294901760
    %366 = vmatmul.f32.gmra.mxu0 %v365
    %v367 = vpop.f32.mrf.mxu0
    %v368 = vadd.f32 %v323, %v367
    %369 = vdwg.mxu0
    %v370 = vand.u32 %v107, 4294901760
    %v371 = vsub.f32 %v107, %v370
    %v372 = vand.u32 %v371, 4294901760
    %373 = vmatpush.msra.mxu0 %v372
    %v374 = vand.u32 %v106, 4294901760
    %v375 = vsub.f32 %v106, %v374
    %v376 = vand.u32 %v375, 4294901760
    %377 = vmatpush.msra.mxu0 %v376
    %v378 = vand.u32 %v105, 4294901760
    %v379 = vsub.f32 %v105, %v378
    %v380 = vand.u32 %v379, 4294901760
    %381 = vmatpush.msra.mxu0 %v380
    %v382 = vand.u32 %v104, 4294901760
    %v383 = vsub.f32 %v104, %v382
    %v384 = vand.u32 %v383, 4294901760
    %385 = vmatpush.msra.mxu0 %v384
    %v386 = vand.u32 %v103, 4294901760
    %v387 = vsub.f32 %v103, %v386
    %v388 = vand.u32 %v387, 4294901760
    %389 = vmatpush.msra.mxu0 %v388
    %v390 = vand.u32 %v102, 4294901760
    %v391 = vsub.f32 %v102, %v390
    %v392 = vand.u32 %v391, 4294901760
    %393 = vmatpush.msra.mxu0 %v392
    %v394 = vand.u32 %v101, 4294901760
    %v395 = vsub.f32 %v101, %v394
    %v396 = vand.u32 %v395, 4294901760
    %397 = vmatpush.msra.mxu0 %v396
    %v398 = vand.u32 %v100, 4294901760
    %v399 = vsub.f32 %v100, %v398
    %v400 = vand.u32 %v399, 4294901760
    %401 = vmatpush.msra.mxu0 %v400
    %v402 = vand.u32 %v99, 4294901760
    %v403 = vsub.f32 %v99, %v402
    %v404 = vand.u32 %v403, 4294901760
    %405 = vmatpush.msra.mxu0 %v404
    %v406 = vand.u32 %v98, 4294901760
    %v407 = vsub.f32 %v98, %v406
    %v408 = vand.u32 %v407, 4294901760
    %409 = vmatpush.msra.mxu0 %v408
    %v410 = vand.u32 %v97, 4294901760
    %v411 = vsub.f32 %v97, %v410
    %v412 = vand.u32 %v411, 4294901760
    %413 = vmatpush.msra.mxu0 %v412
    %v414 = vand.u32 %v96, 4294901760
    %v415 = vsub.f32 %v96, %v414
    %v416 = vand.u32 %v415, 4294901760
    %417 = vmatpush.msra.mxu0 %v416
    %v418 = vand.u32 %v95, 4294901760
    %v419 = vsub.f32 %v95, %v418
    %v420 = vand.u32 %v419, 4294901760
    %421 = vmatpush.msra.mxu0 %v420
    %v422 = vand.u32 %v94, 4294901760
    %v423 = vsub.f32 %v94, %v422
    %v424 = vand.u32 %v423, 4294901760
    %425 = vmatpush.msra.mxu0 %v424
    %v426 = vand.u32 %v93, 4294901760
    %v427 = vsub.f32 %v93, %v426
    %v428 = vand.u32 %v427, 4294901760
    %429 = vmatpush.msra.mxu0 %v428
    %v430 = vand.u32 %v92, 4294901760
    %v431 = vsub.f32 %v92, %v430
    %v432 = vand.u32 %v431, 4294901760
    %433 = vmatpush.msra.mxu0 %v432
    %v434 = vand.u32 %v90, 4294901760
    %435 = vmatmul.f32.gmra.mxu0 %v434
    %v436 = vpop.f32.mrf.mxu0
    %v437 = vadd.f32 %v362, %v436
    %v438 = vand.u32 %v91, 4294901760
    %439 = vmatmul.f32.gmra.mxu0 %v438
    %v440 = vpop.f32.mrf.mxu0
    %v441 = vadd.f32 %v368, %v440
    %442 = vdwg.mxu0
    %v443 = vand.u32 %v107, 4294901760
    %444 = vmatpush.msra.mxu0 %v443
    %v445 = vand.u32 %v106, 4294901760
    %446 = vmatpush.msra.mxu0 %v445
    %v447 = vand.u32 %v105, 4294901760
    %448 = vmatpush.msra.mxu0 %v447
    %v449 = vand.u32 %v104, 4294901760
    %450 = vmatpush.msra.mxu0 %v449
    %v451 = vand.u32 %v103, 4294901760
    %452 = vmatpush.msra.mxu0 %v451
    %v453 = vand.u32 %v102, 4294901760
    %454 = vmatpush.msra.mxu0 %v453
    %v455 = vand.u32 %v101, 4294901760
    %456 = vmatpush.msra.mxu0 %v455
    %v457 = vand.u32 %v100, 4294901760
    %458 = vmatpush.msra.mxu0 %v457
    %v459 = vand.u32 %v99, 4294901760
    %460 = vmatpush.msra.mxu0 %v459
    %v461 = vand.u32 %v98, 4294901760
    %462 = vmatpush.msra.mxu0 %v461
    %v463 = vand.u32 %v97, 4294901760
    %464 = vmatpush.msra.mxu0 %v463
    %v465 = vand.u32 %v96, 4294901760
    %466 = vmatpush.msra.mxu0 %v465
    %v467 = vand.u32 %v95, 4294901760
    %468 = vmatpush.msra.mxu0 %v467
    %v469 = vand.u32 %v94, 4294901760
    %470 = vmatpush.msra.mxu0 %v469
    %v471 = vand.u32 %v93, 4294901760
    %472 = vmatpush.msra.mxu0 %v471
    %v473 = vand.u32 %v92, 4294901760
    %474 = vmatpush.msra.mxu0 %v473
    %v475 = vand.u32 %v90, 4294901760
    %476 = vmatmul.f32.gmra.mxu0 %v475
    %v477 = vpop.f32.mrf.mxu0
    %v478 = vadd.f32 %v437, %v477
    %v479 = vand.u32 %v91, 4294901760
    %480 = vmatmul.f32.gmra.mxu0 %v479
    %v481 = vpop.f32.mrf.mxu0
    %v482 = vadd.f32 %v441, %v481
    %483 = vdwg.mxu0
    %v484 = vmax.f32 %v478, 0.0
    %v485 = vmax.f32 %v482, 0.0
    %v486 = vld [vmem:[#allocation7] sm:$0xff]
    %v487 = vld [vmem:[#allocation7 + $0x8] sm:$0xff]
    %v488 = vld [vmem:[#allocation7 + $0x10] sm:$0xff]
    %v489 = vld [vmem:[#allocation7 + $0x18] sm:$0xff]
    %v490 = vld [vmem:[#allocation7 + $0x20] sm:$0xff]
    %v491 = vld [vmem:[#allocation7 + $0x28] sm:$0xff]
    %v492 = vld [vmem:[#allocation7 + $0x30] sm:$0xff]
    %v493 = vld [vmem:[#allocation7 + $0x38] sm:$0xff]
    %v494 = vld [vmem:[#allocation7 + $0x40] sm:$0xff]
    %v495 = vld [vmem:[#allocation7 + $0x48] sm:$0xff]
    %v496 = vld [vmem:[#allocation7 + $0x50] sm:$0xff]
    %v497 = vld [vmem:[#allocation7 + $0x58] sm:$0xff]
    %v498 = vld [vmem:[#allocation7 + $0x60] sm:$0xff]
    %v499 = vld [vmem:[#allocation7 + $0x68] sm:$0xff]
    %v500 = vld [vmem:[#allocation7 + $0x70] sm:$0xff]
    %v501 = vld [vmem:[#allocation7 + $0x78] sm:$0xff]
    %v502 = vld [vmem:[%s4] sm:$0x1]
    %v504 = vperm.slane %v502, 0
    %v506 = vand.u32 %v501, 4294901760
    %507 = vmatpush.msra.mxu0 %v506
    %v508 = vand.u32 %v500, 4294901760
    %509 = vmatpush.msra.mxu0 %v508
    %v510 = vand.u32 %v499, 4294901760
    %511 = vmatpush.msra.mxu0 %v510
    %v512 = vand.u32 %v498, 4294901760
    %513 = vmatpush.msra.mxu0 %v512
    %v514 = vand.u32 %v497, 4294901760
    %515 = vmatpush.msra.mxu0 %v514
    %v516 = vand.u32 %v496, 4294901760
    %517 = vmatpush.msra.mxu0 %v516
    %v518 = vand.u32 %v495, 4294901760
    %519 = vmatpush.msra.mxu0 %v518
    %v520 = vand.u32 %v494, 4294901760
    %521 = vmatpush.msra.mxu0 %v520
    %v522 = vand.u32 %v493, 4294901760
    %523 = vmatpush.msra.mxu0 %v522
    %v524 = vand.u32 %v492, 4294901760
    %525 = vmatpush.msra.mxu0 %v524
    %v526 = vand.u32 %v491, 4294901760
    %527 = vmatpush.msra.mxu0 %v526
    %v528 = vand.u32 %v490, 4294901760
    %529 = vmatpush.msra.mxu0 %v528
    %v530 = vand.u32 %v489, 4294901760
    %531 = vmatpush.msra.mxu0 %v530
    %v532 = vand.u32 %v488, 4294901760
    %533 = vmatpush.msra.mxu0 %v532
    %v534 = vand.u32 %v487, 4294901760
    %535 = vmatpush.msra.mxu0 %v534
    %v536 = vand.u32 %v486, 4294901760
    %537 = vmatpush.msra.mxu0 %v536
    %v538 = vand.u32 %v484, 4294901760
    %v539 = vsub.f32 %v484, %v538
    %v540 = vand.u32 %v539, 4294901760
    %v541 = vsub.f32 %v539, %v540
    %v542 = vand.u32 %v541, 4294901760
    %543 = vmatmul.f32.gmra.mxu0 %v542
    %v544 = vpop.f32.mrf.mxu0
    %v545 = vadd.f32 %v504, %v544
    %v546 = vand.u32 %v485, 4294901760
    %v547 = vsub.f32 %v485, %v546
    %v548 = vand.u32 %v547, 4294901760
    %v549 = vsub.f32 %v547, %v548
    %v550 = vand.u32 %v549, 4294901760
    %551 = vmatmul.f32.gmra.mxu0 %v550
    %v552 = vpop.f32.mrf.mxu0
    %v553 = vadd.f32 %v504, %v552
    %554 = vdwg.mxu0
    %v555 = vand.u32 %v501, 4294901760
    %v556 = vsub.f32 %v501, %v555
    %v557 = vand.u32 %v556, 4294901760
    %v558 = vsub.f32 %v556, %v557
    %v559 = vand.u32 %v558, 4294901760
    %560 = vmatpush.msra.mxu0 %v559
    %v561 = vand.u32 %v500, 4294901760
    %v562 = vsub.f32 %v500, %v561
    %v563 = vand.u32 %v562, 4294901760
    %v564 = vsub.f32 %v562, %v563
    %v565 = vand.u32 %v564, 4294901760
    %566 = vmatpush.msra.mxu0 %v565
    %v567 = vand.u32 %v499, 4294901760
    %v568 = vsub.f32 %v499, %v567
    %v569 = vand.u32 %v568, 4294901760
    %v570 = vsub.f32 %v568, %v569
    %v571 = vand.u32 %v570, 4294901760
    %572 = vmatpush.msra.mxu0 %v571
    %v573 = vand.u32 %v498, 4294901760
    %v574 = vsub.f32 %v498, %v573
    %v575 = vand.u32 %v574, 4294901760
    %v576 = vsub.f32 %v574, %v575
    %v577 = vand.u32 %v576, 4294901760
    %578 = vmatpush.msra.mxu0 %v577
    %v579 = vand.u32 %v497, 4294901760
    %v580 = vsub.f32 %v497, %v579
    %v581 = vand.u32 %v580, 4294901760
    %v582 = vsub.f32 %v580, %v581
    %v583 = vand.u32 %v582, 4294901760
    %584 = vmatpush.msra.mxu0 %v583
    %v585 = vand.u32 %v496, 4294901760
    %v586 = vsub.f32 %v496, %v585
    %v587 = vand.u32 %v586, 4294901760
    %v588 = vsub.f32 %v586, %v587
    %v589 = vand.u32 %v588, 4294901760
    %590 = vmatpush.msra.mxu0 %v589
    %v591 = vand.u32 %v495, 4294901760
    %v592 = vsub.f32 %v495, %v591
    %v593 = vand.u32 %v592, 4294901760
    %v594 = vsub.f32 %v592, %v593
    %v595 = vand.u32 %v594, 4294901760
    %596 = vmatpush.msra.mxu0 %v595
    %v597 = vand.u32 %v494, 4294901760
    %v598 = vsub.f32 %v494, %v597
    %v599 = vand.u32 %v598, 4294901760
    %v600 = vsub.f32 %v598, %v599
    %v601 = vand.u32 %v600, 4294901760
    %602 = vmatpush.msra.mxu0 %v601
    %v603 = vand.u32 %v493, 4294901760
    %v604 = vsub.f32 %v493, %v603
    %v605 = vand.u32 %v604, 4294901760
    %v606 = vsub.f32 %v604, %v605
    %v607 = vand.u32 %v606, 4294901760
    %608 = vmatpush.msra.mxu0 %v607
    %v609 = vand.u32 %v492, 4294901760
    %v610 = vsub.f32 %v492, %v609
    %v611 = vand.u32 %v610, 4294901760
    %v612 = vsub.f32 %v610, %v611
    %v613 = vand.u32 %v612, 4294901760
    %614 = vmatpush.msra.mxu0 %v613
    %v615 = vand.u32 %v491, 4294901760
    %v616 = vsub.f32 %v491, %v615
    %v617 = vand.u32 %v616, 4294901760
    %v618 = vsub.f32 %v616, %v617
    %v619 = vand.u32 %v618, 4294901760
    %620 = vmatpush.msra.mxu0 %v619
    %v621 = vand.u32 %v490, 4294901760
    %v622 = vsub.f32 %v490, %v621
    %v623 = vand.u32 %v622, 4294901760
    %v624 = vsub.f32 %v622, %v623
    %v625 = vand.u32 %v624, 4294901760
    %626 = vmatpush.msra.mxu0 %v625
    %v627 = vand.u32 %v489, 4294901760
    %v628 = vsub.f32 %v489, %v627
    %v629 = vand.u32 %v628, 4294901760
    %v630 = vsub.f32 %v628, %v629
    %v631 = vand.u32 %v630, 4294901760
    %632 = vmatpush.msra.mxu0 %v631
    %v633 = vand.u32 %v488, 4294901760
    %v634 = vsub.f32 %v488, %v633
    %v635 = vand.u32 %v634, 4294901760
    %v636 = vsub.f32 %v634, %v635
    %v637 = vand.u32 %v636, 4294901760
    %638 = vmatpush.msra.mxu0 %v637
    %v639 = vand.u32 %v487, 4294901760
    %v640 = vsub.f32 %v487, %v639
    %v641 = vand.u32 %v640, 4294901760
    %v642 = vsub.f32 %v640, %v641
    %v643 = vand.u32 %v642, 4294901760
    %644 = vmatpush.msra.mxu0 %v643
    %v645 = vand.u32 %v486, 4294901760
    %v646 = vsub.f32 %v486, %v645
    %v647 = vand.u32 %v646, 4294901760
    %v648 = vsub.f32 %v646, %v647
    %v649 = vand.u32 %v648, 4294901760
    %650 = vmatpush.msra.mxu0 %v649
    %v651 = vand.u32 %v484, 4294901760
    %652 = vmatmul.f32.gmra.mxu0 %v651
    %v653 = vpop.f32.mrf.mxu0
    %v654 = vadd.f32 %v545, %v653
    %v655 = vand.u32 %v485, 4294901760
    %656 = vmatmul.f32.gmra.mxu0 %v655
    %v657 = vpop.f32.mrf.mxu0
    %v658 = vadd.f32 %v553, %v657
    %659 = vdwg.mxu0
    %v660 = vand.u32 %v501, 4294901760
    %v661 = vsub.f32 %v501, %v660
    %662 = vmatpush.msra.mxu0 %v661
    %v663 = vand.u32 %v500, 4294901760
    %v664 = vsub.f32 %v500, %v663
    %665 = vmatpush.msra.mxu0 %v664
    %v666 = vand.u32 %v499, 4294901760
    %v667 = vsub.f32 %v499, %v666
    %668 = vmatpush.msra.mxu0 %v667
    %v669 = vand.u32 %v498, 4294901760
    %v670 = vsub.f32 %v498, %v669
    %671 = vmatpush.msra.mxu0 %v670
    %v672 = vand.u32 %v497, 4294901760
    %v673 = vsub.f32 %v497, %v672
    %674 = vmatpush.msra.mxu0 %v673
    %v675 = vand.u32 %v496, 4294901760
    %v676 = vsub.f32 %v496, %v675
    %677 = vmatpush.msra.mxu0 %v676
    %v678 = vand.u32 %v495, 4294901760
    %v679 = vsub.f32 %v495, %v678
    %680 = vmatpush.msra.mxu0 %v679
    %v681 = vand.u32 %v494, 4294901760
    %v682 = vsub.f32 %v494, %v681
    %683 = vmatpush.msra.mxu0 %v682
    %v684 = vand.u32 %v493, 4294901760
    %v685 = vsub.f32 %v493, %v684
    %686 = vmatpush.msra.mxu0 %v685
    %v687 = vand.u32 %v492, 4294901760
    %v688 = vsub.f32 %v492, %v687
    %689 = vmatpush.msra.mxu0 %v688
    %v690 = vand.u32 %v491, 4294901760
    %v691 = vsub.f32 %v491, %v690
    %692 = vmatpush.msra.mxu0 %v691
    %v693 = vand.u32 %v490, 4294901760
    %v694 = vsub.f32 %v490, %v693
    %695 = vmatpush.msra.mxu0 %v694
    %v696 = vand.u32 %v489, 4294901760
    %v697 = vsub.f32 %v489, %v696
    %698 = vmatpush.msra.mxu0 %v697
    %v699 = vand.u32 %v488, 4294901760
    %v700 = vsub.f32 %v488, %v699
    %701 = vmatpush.msra.mxu0 %v700
    %v702 = vand.u32 %v487, 4294901760
    %v703 = vsub.f32 %v487, %v702
    %704 = vmatpush.msra.mxu0 %v703
    %v705 = vand.u32 %v486, 4294901760
    %v706 = vsub.f32 %v486, %v705
    %707 = vmatpush.msra.mxu0 %v706
    %v708 = vand.u32 %v484, 4294901760
    %v709 = vsub.f32 %v484, %v708
    %710 = vmatmul.f32.gmra.mxu0 %v709
    %v711 = vpop.f32.mrf.mxu0
    %v712 = vadd.f32 %v654, %v711
    %v713 = vand.u32 %v485, 4294901760
    %v714 = vsub.f32 %v485, %v713
    %715 = vmatmul.f32.gmra.mxu0 %v714
    %v716 = vpop.f32.mrf.mxu0
    %v717 = vadd.f32 %v658, %v716
    %718 = vdwg.mxu0
    %v719 = vand.u32 %v501, 4294901760
    %720 = vmatpush.msra.mxu0 %v719
    %v721 = vand.u32 %v500, 4294901760
    %722 = vmatpush.msra.mxu0 %v721
    %v723 = vand.u32 %v499, 4294901760
    %724 = vmatpush.msra.mxu0 %v723
    %v725 = vand.u32 %v498, 4294901760
    %726 = vmatpush.msra.mxu0 %v725
    %v727 = vand.u32 %v497, 4294901760
    %728 = vmatpush.msra.mxu0 %v727
    %v729 = vand.u32 %v496, 4294901760
    %730 = vmatpush.msra.mxu0 %v729
    %v731 = vand.u32 %v495, 4294901760
    %732 = vmatpush.msra.mxu0 %v731
    %v733 = vand.u32 %v494, 4294901760
    %734 = vmatpush.msra.mxu0 %v733
    %v735 = vand.u32 %v493, 4294901760
    %736 = vmatpush.msra.mxu0 %v735
    %v737 = vand.u32 %v492, 4294901760
    %738 = vmatpush.msra.mxu0 %v737
    %v739 = vand.u32 %v491, 4294901760
    %740 = vmatpush.msra.mxu0 %v739
    %v741 = vand.u32 %v490, 4294901760
    %742 = vmatpush.msra.mxu0 %v741
    %v743 = vand.u32 %v489, 4294901760
    %744 = vmatpush.msra.mxu0 %v743
    %v745 = vand.u32 %v488, 4294901760
    %746 = vmatpush.msra.mxu0 %v745
    %v747 = vand.u32 %v487, 4294901760
    %748 = vmatpush.msra.mxu0 %v747
    %v749 = vand.u32 %v486, 4294901760
    %750 = vmatpush.msra.mxu0 %v749
    %v751 = vand.u32 %v484, 4294901760
    %v752 = vsub.f32 %v484, %v751
    %v753 = vand.u32 %v752, 4294901760
    %754 = vmatmul.f32.gmra.mxu0 %v753
    %v755 = vpop.f32.mrf.mxu0
    %v756 = vadd.f32 %v712, %v755
    %v757 = vand.u32 %v485, 4294901760
    %v758 = vsub.f32 %v485, %v757
    %v759 = vand.u32 %v758, 4294901760
    %760 = vmatmul.f32.gmra.mxu0 %v759
    %v761 = vpop.f32.mrf.mxu0
    %v762 = vadd.f32 %v717, %v761
    %763 = vdwg.mxu0
    %v764 = vand.u32 %v501, 4294901760
    %v765 = vsub.f32 %v501, %v764
    %v766 = vand.u32 %v765, 4294901760
    %767 = vmatpush.msra.mxu0 %v766
    %v768 = vand.u32 %v500, 4294901760
    %v769 = vsub.f32 %v500, %v768
    %v770 = vand.u32 %v769, 4294901760
    %771 = vmatpush.msra.mxu0 %v770
    %v772 = vand.u32 %v499, 4294901760
    %v773 = vsub.f32 %v499, %v772
    %v774 = vand.u32 %v773, 4294901760
    %775 = vmatpush.msra.mxu0 %v774
    %v776 = vand.u32 %v498, 4294901760
    %v777 = vsub.f32 %v498, %v776
    %v778 = vand.u32 %v777, 4294901760
    %779 = vmatpush.msra.mxu0 %v778
    %v780 = vand.u32 %v497, 4294901760
    %v781 = vsub.f32 %v497, %v780
    %v782 = vand.u32 %v781, 4294901760
    %783 = vmatpush.msra.mxu0 %v782
    %v784 = vand.u32 %v496, 4294901760
    %v785 = vsub.f32 %v496, %v784
    %v786 = vand.u32 %v785, 4294901760
    %787 = vmatpush.msra.mxu0 %v786
    %v788 = vand.u32 %v495, 4294901760
    %v789 = vsub.f32 %v495, %v788
    %v790 = vand.u32 %v789, 4294901760
    %791 = vmatpush.msra.mxu0 %v790
    %v792 = vand.u32 %v494, 4294901760
    %v793 = vsub.f32 %v494, %v792
    %v794 = vand.u32 %v793, 4294901760
    %795 = vmatpush.msra.mxu0 %v794
    %v796 = vand.u32 %v493, 4294901760
    %v797 = vsub.f32 %v493, %v796
    %v798 = vand.u32 %v797, 4294901760
    %799 = vmatpush.msra.mxu0 %v798
    %v800 = vand.u32 %v492, 4294901760
    %v801 = vsub.f32 %v492, %v800
    %v802 = vand.u32 %v801, 4294901760
    %803 = vmatpush.msra.mxu0 %v802
    %v804 = vand.u32 %v491, 4294901760
    %v805 = vsub.f32 %v491, %v804
    %v806 = vand.u32 %v805, 4294901760
    %807 = vmatpush.msra.mxu0 %v806
    %v808 = vand.u32 %v490, 4294901760
    %v809 = vsub.f32 %v490, %v808
    %v810 = vand.u32 %v809, 4294901760
    %811 = vmatpush.msra.mxu0 %v810
    %v812 = vand.u32 %v489, 4294901760
    %v813 = vsub.f32 %v489, %v812
    %v814 = vand.u32 %v813, 4294901760
    %815 = vmatpush.msra.mxu0 %v814
    %v816 = vand.u32 %v488, 4294901760
    %v817 = vsub.f32 %v488, %v816
    %v818 = vand.u32 %v817, 4294901760
    %819 = vmatpush.msra.mxu0 %v818
    %v820 = vand.u32 %v487, 4294901760
    %v821 = vsub.f32 %v487, %v820
    %v822 = vand.u32 %v821, 4294901760
    %823 = vmatpush.msra.mxu0 %v822
    %v824 = vand.u32 %v486, 4294901760
    %v825 = vsub.f32 %v486, %v824
    %v826 = vand.u32 %v825, 4294901760
    %827 = vmatpush.msra.mxu0 %v826
    %v828 = vand.u32 %v484, 4294901760
    %829 = vmatmul.f32.gmra.mxu0 %v828
    %v830 = vpop.f32.mrf.mxu0
    %v831 = vadd.f32 %v756, %v830
    %v832 = vand.u32 %v485, 4294901760
    %833 = vmatmul.f32.gmra.mxu0 %v832
    %v834 = vpop.f32.mrf.mxu0
    %v835 = vadd.f32 %v762, %v834
    %836 = vdwg.mxu0
    %v837 = vand.u32 %v501, 4294901760
    %838 = vmatpush.msra.mxu0 %v837
    %v839 = vand.u32 %v500, 4294901760
    %840 = vmatpush.msra.mxu0 %v839
    %v841 = vand.u32 %v499, 4294901760
    %842 = vmatpush.msra.mxu0 %v841
    %v843 = vand.u32 %v498, 4294901760
    %844 = vmatpush.msra.mxu0 %v843
    %v845 = vand.u32 %v497, 4294901760
    %846 = vmatpush.msra.mxu0 %v845
    %v847 = vand.u32 %v496, 4294901760
    %848 = vmatpush.msra.mxu0 %v847
    %v849 = vand.u32 %v495, 4294901760
    %850 = vmatpush.msra.mxu0 %v849
    %v851 = vand.u32 %v494, 4294901760
    %852 = vmatpush.msra.mxu0 %v851
    %v853 = vand.u32 %v493, 4294901760
    %854 = vmatpush.msra.mxu0 %v853
    %v855 = vand.u32 %v492, 4294901760
    %856 = vmatpush.msra.mxu0 %v855
    %v857 = vand.u32 %v491, 4294901760
    %858 = vmatpush.msra.mxu0 %v857
    %v859 = vand.u32 %v490, 4294901760
    %860 = vmatpush.msra.mxu0 %v859
    %v861 = vand.u32 %v489, 4294901760
    %862 = vmatpush.msra.mxu0 %v861
    %v863 = vand.u32 %v488, 4294901760
    %864 = vmatpush.msra.mxu0 %v863
    %v865 = vand.u32 %v487, 4294901760
    %866 = vmatpush.msra.mxu0 %v865
    %v867 = vand.u32 %v486, 4294901760
    %868 = vmatpush.msra.mxu0 %v867
    %v869 = vand.u32 %v484, 4294901760
    %870 = vmatmul.f32.gmra.mxu0 %v869
    %v871 = vpop.f32.mrf.mxu0
    %v872 = vadd.f32 %v831, %v871
    %v873 = vand.u32 %v485, 4294901760
    %874 = vmatmul.f32.gmra.mxu0 %v873
    %v875 = vpop.f32.mrf.mxu0
    %v876 = vadd.f32 %v835, %v875
    %877 = vdwg.mxu0
    %v878 = vmax.f32 %v872, 0.0
    %v879 = vmax.f32 %v876, 0.0
    %v880 = vld [vmem:[#allocation8] sm:$0xff]
    %v881 = vld [vmem:[#allocation8 + $0x8] sm:$0xff]
    %v882 = vld [vmem:[#allocation8 + $0x10] sm:$0xff]
    %v883 = vld [vmem:[#allocation8 + $0x18] sm:$0xff]
    %v884 = vld [vmem:[#allocation8 + $0x20] sm:$0xff]
    %v885 = vld [vmem:[#allocation8 + $0x28] sm:$0xff]
    %v886 = vld [vmem:[#allocation8 + $0x30] sm:$0xff]
    %v887 = vld [vmem:[#allocation8 + $0x38] sm:$0xff]
    %v888 = vld [vmem:[#allocation8 + $0x40] sm:$0xff]
    %v889 = vld [vmem:[#allocation8 + $0x48] sm:$0xff]
    %v890 = vld [vmem:[#allocation8 + $0x50] sm:$0xff]
    %v891 = vld [vmem:[#allocation8 + $0x58] sm:$0xff]
    %v892 = vld [vmem:[#allocation8 + $0x60] sm:$0xff]
    %v893 = vld [vmem:[#allocation8 + $0x68] sm:$0xff]
    %v894 = vld [vmem:[#allocation8 + $0x70] sm:$0xff]
    %v895 = vld [vmem:[#allocation8 + $0x78] sm:$0xff]
    %v896 = vld [vmem:[%s6] sm:$0x1]
    %v898 = vperm.slane %v896, 0
    %v900 = vand.u32 %v895, 4294901760
    %901 = vmatpush.msra.mxu0 %v900
    %v902 = vand.u32 %v894, 4294901760
    %903 = vmatpush.msra.mxu0 %v902
    %v904 = vand.u32 %v893, 4294901760
    %905 = vmatpush.msra.mxu0 %v904
    %v906 = vand.u32 %v892, 4294901760
    %907 = vmatpush.msra.mxu0 %v906
    %v908 = vand.u32 %v891, 4294901760
    %909 = vmatpush.msra.mxu0 %v908
    %v910 = vand.u32 %v890, 4294901760
    %911 = vmatpush.msra.mxu0 %v910
    %v912 = vand.u32 %v889, 4294901760
    %913 = vmatpush.msra.mxu0 %v912
    %v914 = vand.u32 %v888, 4294901760
    %915 = vmatpush.msra.mxu0 %v914
    %v916 = vand.u32 %v887, 4294901760
    %917 = vmatpush.msra.mxu0 %v916
    %v918 = vand.u32 %v886, 4294901760
    %919 = vmatpush.msra.mxu0 %v918
    %v920 = vand.u32 %v885, 4294901760
    %921 = vmatpush.msra.mxu0 %v920
    %v922 = vand.u32 %v884, 4294901760
    %923 = vmatpush.msra.mxu0 %v922
    %v924 = vand.u32 %v883, 4294901760
    %925 = vmatpush.msra.mxu0 %v924
    %v926 = vand.u32 %v882, 4294901760
    %927 = vmatpush.msra.mxu0 %v926
    %v928 = vand.u32 %v881, 4294901760
    %929 = vmatpush.msra.mxu0 %v928
    %v930 = vand.u32 %v880, 4294901760
    %931 = vmatpush.msra.mxu0 %v930
    %v932 = vand.u32 %v878, 4294901760
    %v933 = vsub.f32 %v878, %v932
    %v934 = vand.u32 %v933, 4294901760
    %v935 = vsub.f32 %v933, %v934
    %v936 = vand.u32 %v935, 4294901760
    %937 = vmatmul.f32.gmra.mxu0 %v936
    %v938 = vpop.f32.mrf.mxu0
    %v939 = vadd.f32 %v898, %v938
    %v940 = vand.u32 %v879, 4294901760
    %v941 = vsub.f32 %v879, %v940
    %v942 = vand.u32 %v941, 4294901760
    %v943 = vsub.f32 %v941, %v942
    %v944 = vand.u32 %v943, 4294901760
    %945 = vmatmul.f32.gmra.mxu0 %v944
    %v946 = vpop.f32.mrf.mxu0
    %v947 = vadd.f32 %v898, %v946
    %948 = vdwg.mxu0
    %v949 = vand.u32 %v895, 4294901760
    %v950 = vsub.f32 %v895, %v949
    %v951 = vand.u32 %v950, 4294901760
    %v952 = vsub.f32 %v950, %v951
    %v953 = vand.u32 %v952, 4294901760
    %954 = vmatpush.msra.mxu0 %v953
    %v955 = vand.u32 %v894, 4294901760
    %v956 = vsub.f32 %v894, %v955
    %v957 = vand.u32 %v956, 4294901760
    %v958 = vsub.f32 %v956, %v957
    %v959 = vand.u32 %v958, 4294901760
    %960 = vmatpush.msra.mxu0 %v959
    %v961 = vand.u32 %v893, 4294901760
    %v962 = vsub.f32 %v893, %v961
    %v963 = vand.u32 %v962, 4294901760
    %v964 = vsub.f32 %v962, %v963
    %v965 = vand.u32 %v964, 4294901760
    %966 = vmatpush.msra.mxu0 %v965
    %v967 = vand.u32 %v892, 4294901760
    %v968 = vsub.f32 %v892, %v967
    %v969 = vand.u32 %v968, 4294901760
    %v970 = vsub.f32 %v968, %v969
    %v971 = vand.u32 %v970, 4294901760
    %972 = vmatpush.msra.mxu0 %v971
    %v973 = vand.u32 %v891, 4294901760
    %v974 = vsub.f32 %v891, %v973
    %v975 = vand.u32 %v974, 4294901760
    %v976 = vsub.f32 %v974, %v975
    %v977 = vand.u32 %v976, 4294901760
    %978 = vmatpush.msra.mxu0 %v977
    %v979 = vand.u32 %v890, 4294901760
    %v980 = vsub.f32 %v890, %v979
    %v981 = vand.u32 %v980, 4294901760
    %v982 = vsub.f32 %v980, %v981
    %v983 = vand.u32 %v982, 4294901760
    %984 = vmatpush.msra.mxu0 %v983
    %v985 = vand.u32 %v889, 4294901760
    %v986 = vsub.f32 %v889, %v985
    %v987 = vand.u32 %v986, 4294901760
    %v988 = vsub.f32 %v986, %v987
    %v989 = vand.u32 %v988, 4294901760
    %990 = vmatpush.msra.mxu0 %v989
    %v991 = vand.u32 %v888, 4294901760
    %v992 = vsub.f32 %v888, %v991
    %v993 = vand.u32 %v992, 4294901760
    %v994 = vsub.f32 %v992, %v993
    %v995 = vand.u32 %v994, 4294901760
    %996 = vmatpush.msra.mxu0 %v995
    %v997 = vand.u32 %v887, 4294901760
    %v998 = vsub.f32 %v887, %v997
    %v999 = vand.u32 %v998, 4294901760
    %v1000 = vsub.f32 %v998, %v999
    %v1001 = vand.u32 %v1000, 4294901760
    %1002 = vmatpush.msra.mxu0 %v1001
    %v1003 = vand.u32 %v886, 4294901760
    %v1004 = vsub.f32 %v886, %v1003
    %v1005 = vand.u32 %v1004, 4294901760
    %v1006 = vsub.f32 %v1004, %v1005
    %v1007 = vand.u32 %v1006, 4294901760
    %1008 = vmatpush.msra.mxu0 %v1007
    %v1009 = vand.u32 %v885, 4294901760
    %v1010 = vsub.f32 %v885, %v1009
    %v1011 = vand.u32 %v1010, 4294901760
    %v1012 = vsub.f32 %v1010, %v1011
    %v1013 = vand.u32 %v1012, 4294901760
    %1014 = vmatpush.msra.mxu0 %v1013
    %v1015 = vand.u32 %v884, 4294901760
    %v1016 = vsub.f32 %v884, %v1015
    %v1017 = vand.u32 %v1016, 4294901760
    %v1018 = vsub.f32 %v1016, %v1017
    %v1019 = vand.u32 %v1018, 4294901760
    %1020 = vmatpush.msra.mxu0 %v1019
    %v1021 = vand.u32 %v883, 4294901760
    %v1022 = vsub.f32 %v883, %v1021
    %v1023 = vand.u32 %v1022, 4294901760
    %v1024 = vsub.f32 %v1022, %v1023
    %v1025 = vand.u32 %v1024, 4294901760
    %1026 = vmatpush.msra.mxu0 %v1025
    %v1027 = vand.u32 %v882, 4294901760
    %v1028 = vsub.f32 %v882, %v1027
    %v1029 = vand.u32 %v1028, 4294901760
    %v1030 = vsub.f32 %v1028, %v1029
    %v1031 = vand.u32 %v1030, 4294901760
    %1032 = vmatpush.msra.mxu0 %v1031
    %v1033 = vand.u32 %v881, 4294901760
    %v1034 = vsub.f32 %v881, %v1033
    %v1035 = vand.u32 %v1034, 4294901760
    %v1036 = vsub.f32 %v1034, %v1035
    %v1037 = vand.u32 %v1036, 4294901760
    %1038 = vmatpush.msra.mxu0 %v1037
    %v1039 = vand.u32 %v880, 4294901760
    %v1040 = vsub.f32 %v880, %v1039
    %v1041 = vand.u32 %v1040, 4294901760
    %v1042 = vsub.f32 %v1040, %v1041
    %v1043 = vand.u32 %v1042, 4294901760
    %1044 = vmatpush.msra.mxu0 %v1043
    %v1045 = vand.u32 %v878, 4294901760
    %1046 = vmatmul.f32.gmra.mxu0 %v1045
    %v1047 = vpop.f32.mrf.mxu0
    %v1048 = vadd.f32 %v939, %v1047
    %v1049 = vand.u32 %v879, 4294901760
    %1050 = vmatmul.f32.gmra.mxu0 %v1049
    %v1051 = vpop.f32.mrf.mxu0
    %v1052 = vadd.f32 %v947, %v1051
    %1053 = vdwg.mxu0
    %v1054 = vand.u32 %v895, 4294901760
    %v1055 = vsub.f32 %v895, %v1054
    %1056 = vmatpush.msra.mxu0 %v1055
    %v1057 = vand.u32 %v894, 4294901760
    %v1058 = vsub.f32 %v894, %v1057
    %1059 = vmatpush.msra.mxu0 %v1058
    %v1060 = vand.u32 %v893, 4294901760
    %v1061 = vsub.f32 %v893, %v1060
    %1062 = vmatpush.msra.mxu0 %v1061
    %v1063 = vand.u32 %v892, 4294901760
    %v1064 = vsub.f32 %v892, %v1063
    %1065 = vmatpush.msra.mxu0 %v1064
    %v1066 = vand.u32 %v891, 4294901760
    %v1067 = vsub.f32 %v891, %v1066
    %1068 = vmatpush.msra.mxu0 %v1067
    %v1069 = vand.u32 %v890, 4294901760
    %v1070 = vsub.f32 %v890, %v1069
    %1071 = vmatpush.msra.mxu0 %v1070
    %v1072 = vand.u32 %v889, 4294901760
    %v1073 = vsub.f32 %v889, %v1072
    %1074 = vmatpush.msra.mxu0 %v1073
    %v1075 = vand.u32 %v888, 4294901760
    %v1076 = vsub.f32 %v888, %v1075
    %1077 = vmatpush.msra.mxu0 %v1076
    %v1078 = vand.u32 %v887, 4294901760
    %v1079 = vsub.f32 %v887, %v1078
    %1080 = vmatpush.msra.mxu0 %v1079
    %v1081 = vand.u32 %v886, 4294901760
    %v1082 = vsub.f32 %v886, %v1081
    %1083 = vmatpush.msra.mxu0 %v1082
    %v1084 = vand.u32 %v885, 4294901760
    %v1085 = vsub.f32 %v885, %v1084
    %1086 = vmatpush.msra.mxu0 %v1085
    %v1087 = vand.u32 %v884, 4294901760
    %v1088 = vsub.f32 %v884, %v1087
    %1089 = vmatpush.msra.mxu0 %v1088
    %v1090 = vand.u32 %v883, 4294901760
    %v1091 = vsub.f32 %v883, %v1090
    %1092 = vmatpush.msra.mxu0 %v1091
    %v1093 = vand.u32 %v882, 4294901760
    %v1094 = vsub.f32 %v882, %v1093
    %1095 = vmatpush.msra.mxu0 %v1094
    %v1096 = vand.u32 %v881, 4294901760
    %v1097 = vsub.f32 %v881, %v1096
    %1098 = vmatpush.msra.mxu0 %v1097
    %v1099 = vand.u32 %v880, 4294901760
    %v1100 = vsub.f32 %v880, %v1099
    %1101 = vmatpush.msra.mxu0 %v1100
    %v1102 = vand.u32 %v878, 4294901760
    %v1103 = vsub.f32 %v878, %v1102
    %1104 = vmatmul.f32.gmra.mxu0 %v1103
    %v1105 = vpop.f32.mrf.mxu0
    %v1106 = vadd.f32 %v1048, %v1105
    %v1107 = vand.u32 %v879, 4294901760
    %v1108 = vsub.f32 %v879, %v1107
    %1109 = vmatmul.f32.gmra.mxu0 %v1108
    %v1110 = vpop.f32.mrf.mxu0
    %v1111 = vadd.f32 %v1052, %v1110
    %1112 = vdwg.mxu0
    %v1113 = vand.u32 %v895, 4294901760
    %1114 = vmatpush.msra.mxu0 %v1113
    %v1115 = vand.u32 %v894, 4294901760
    %1116 = vmatpush.msra.mxu0 %v1115
    %v1117 = vand.u32 %v893, 4294901760
    %1118 = vmatpush.msra.mxu0 %v1117
    %v1119 = vand.u32 %v892, 4294901760
    %1120 = vmatpush.msra.mxu0 %v1119
    %v1121 = vand.u32 %v891, 4294901760
    %1122 = vmatpush.msra.mxu0 %v1121
    %v1123 = vand.u32 %v890, 4294901760
    %1124 = vmatpush.msra.mxu0 %v1123
    %v1125 = vand.u32 %v889, 4294901760
    %1126 = vmatpush.msra.mxu0 %v1125
    %v1127 = vand.u32 %v888, 4294901760
    %1128 = vmatpush.msra.mxu0 %v1127
    %v1129 = vand.u32 %v887, 4294901760
    %1130 = vmatpush.msra.mxu0 %v1129
    %v1131 = vand.u32 %v886, 4294901760
    %1132 = vmatpush.msra.mxu0 %v1131
    %v1133 = vand.u32 %v885, 4294901760
    %1134 = vmatpush.msra.mxu0 %v1133
    %v1135 = vand.u32 %v884, 4294901760
    %1136 = vmatpush.msra.mxu0 %v1135
    %v1137 = vand.u32 %v883, 4294901760
    %1138 = vmatpush.msra.mxu0 %v1137
    %v1139 = vand.u32 %v882, 4294901760
    %1140 = vmatpush.msra.mxu0 %v1139
    %v1141 = vand.u32 %v881, 4294901760
    %1142 = vmatpush.msra.mxu0 %v1141
    %v1143 = vand.u32 %v880, 4294901760
    %1144 = vmatpush.msra.mxu0 %v1143
    %v1145 = vand.u32 %v878, 4294901760
    %v1146 = vsub.f32 %v878, %v1145
    %v1147 = vand.u32 %v1146, 4294901760
    %1148 = vmatmul.f32.gmra.mxu0 %v1147
    %v1149 = vpop.f32.mrf.mxu0
    %v1150 = vadd.f32 %v1106, %v1149
    %v1151 = vand.u32 %v879, 4294901760
    %v1152 = vsub.f32 %v879, %v1151
    %v1153 = vand.u32 %v1152, 4294901760
    %1154 = vmatmul.f32.gmra.mxu0 %v1153
    %v1155 = vpop.f32.mrf.mxu0
    %v1156 = vadd.f32 %v1111, %v1155
    %1157 = vdwg.mxu0
    %v1158 = vand.u32 %v895, 4294901760
    %v1159 = vsub.f32 %v895, %v1158
    %v1160 = vand.u32 %v1159, 4294901760
    %1161 = vmatpush.msra.mxu0 %v1160
    %v1162 = vand.u32 %v894, 4294901760
    %v1163 = vsub.f32 %v894, %v1162
    %v1164 = vand.u32 %v1163, 4294901760
    %1165 = vmatpush.msra.mxu0 %v1164
    %v1166 = vand.u32 %v893, 4294901760
    %v1167 = vsub.f32 %v893, %v1166
    %v1168 = vand.u32 %v1167, 4294901760
    %1169 = vmatpush.msra.mxu0 %v1168
    %v1170 = vand.u32 %v892, 4294901760
    %v1171 = vsub.f32 %v892, %v1170
    %v1172 = vand.u32 %v1171, 4294901760
    %1173 = vmatpush.msra.mxu0 %v1172
    %v1174 = vand.u32 %v891, 4294901760
    %v1175 = vsub.f32 %v891, %v1174
    %v1176 = vand.u32 %v1175, 4294901760
    %1177 = vmatpush.msra.mxu0 %v1176
    %v1178 = vand.u32 %v890, 4294901760
    %v1179 = vsub.f32 %v890, %v1178
    %v1180 = vand.u32 %v1179, 4294901760
    %1181 = vmatpush.msra.mxu0 %v1180
    %v1182 = vand.u32 %v889, 4294901760
    %v1183 = vsub.f32 %v889, %v1182
    %v1184 = vand.u32 %v1183, 4294901760
    %1185 = vmatpush.msra.mxu0 %v1184
    %v1186 = vand.u32 %v888, 4294901760
    %v1187 = vsub.f32 %v888, %v1186
    %v1188 = vand.u32 %v1187, 4294901760
    %1189 = vmatpush.msra.mxu0 %v1188
    %v1190 = vand.u32 %v887, 4294901760
    %v1191 = vsub.f32 %v887, %v1190
    %v1192 = vand.u32 %v1191, 4294901760
    %1193 = vmatpush.msra.mxu0 %v1192
    %v1194 = vand.u32 %v886, 4294901760
    %v1195 = vsub.f32 %v886, %v1194
    %v1196 = vand.u32 %v1195, 4294901760
    %1197 = vmatpush.msra.mxu0 %v1196
    %v1198 = vand.u32 %v885, 4294901760
    %v1199 = vsub.f32 %v885, %v1198
    %v1200 = vand.u32 %v1199, 4294901760
    %1201 = vmatpush.msra.mxu0 %v1200
    %v1202 = vand.u32 %v884, 4294901760
    %v1203 = vsub.f32 %v884, %v1202
    %v1204 = vand.u32 %v1203, 4294901760
    %1205 = vmatpush.msra.mxu0 %v1204
    %v1206 = vand.u32 %v883, 4294901760
    %v1207 = vsub.f32 %v883, %v1206
    %v1208 = vand.u32 %v1207, 4294901760
    %1209 = vmatpush.msra.mxu0 %v1208
    %v1210 = vand.u32 %v882, 4294901760
    %v1211 = vsub.f32 %v882, %v1210
    %v1212 = vand.u32 %v1211, 4294901760
    %1213 = vmatpush.msra.mxu0 %v1212
    %v1214 = vand.u32 %v881, 4294901760
    %v1215 = vsub.f32 %v881, %v1214
    %v1216 = vand.u32 %v1215, 4294901760
    %1217 = vmatpush.msra.mxu0 %v1216
    %v1218 = vand.u32 %v880, 4294901760
    %v1219 = vsub.f32 %v880, %v1218
    %v1220 = vand.u32 %v1219, 4294901760
    %1221 = vmatpush.msra.mxu0 %v1220
    %v1222 = vand.u32 %v878, 4294901760
    %1223 = vmatmul.f32.gmra.mxu0 %v1222
    %v1224 = vpop.f32.mrf.mxu0
    %v1225 = vadd.f32 %v1150, %v1224
    %v1226 = vand.u32 %v879, 4294901760
    %1227 = vmatmul.f32.gmra.mxu0 %v1226
    %v1228 = vpop.f32.mrf.mxu0
    %v1229 = vadd.f32 %v1156, %v1228
    %1230 = vdwg.mxu0
    %v1231 = vand.u32 %v895, 4294901760
    %1232 = vmatpush.msra.mxu0 %v1231
    %v1233 = vand.u32 %v894, 4294901760
    %1234 = vmatpush.msra.mxu0 %v1233
    %v1235 = vand.u32 %v893, 4294901760
    %1236 = vmatpush.msra.mxu0 %v1235
    %v1237 = vand.u32 %v892, 4294901760
    %1238 = vmatpush.msra.mxu0 %v1237
    %v1239 = vand.u32 %v891, 4294901760
    %1240 = vmatpush.msra.mxu0 %v1239
    %v1241 = vand.u32 %v890, 4294901760
    %1242 = vmatpush.msra.mxu0 %v1241
    %v1243 = vand.u32 %v889, 4294901760
    %1244 = vmatpush.msra.mxu0 %v1243
    %v1245 = vand.u32 %v888, 4294901760
    %1246 = vmatpush.msra.mxu0 %v1245
    %v1247 = vand.u32 %v887, 4294901760
    %1248 = vmatpush.msra.mxu0 %v1247
    %v1249 = vand.u32 %v886, 4294901760
    %1250 = vmatpush.msra.mxu0 %v1249
    %v1251 = vand.u32 %v885, 4294901760
    %1252 = vmatpush.msra.mxu0 %v1251
    %v1253 = vand.u32 %v884, 4294901760
    %1254 = vmatpush.msra.mxu0 %v1253
    %v1255 = vand.u32 %v883, 4294901760
    %1256 = vmatpush.msra.mxu0 %v1255
    %v1257 = vand.u32 %v882, 4294901760
    %1258 = vmatpush.msra.mxu0 %v1257
    %v1259 = vand.u32 %v881, 4294901760
    %1260 = vmatpush.msra.mxu0 %v1259
    %v1261 = vand.u32 %v880, 4294901760
    %1262 = vmatpush.msra.mxu0 %v1261
    %v1263 = vand.u32 %v878, 4294901760
    %1264 = vmatmul.f32.gmra.mxu0 %v1263
    %v1265 = vpop.f32.mrf.mxu0
    %v1266 = vadd.f32 %v1225, %v1265
    %v1267 = vand.u32 %v879, 4294901760
    %1268 = vmatmul.f32.gmra.mxu0 %v1267
    %v1269 = vpop.f32.mrf.mxu0
    %v1270 = vadd.f32 %v1229, %v1269
    %1271 = vdwg.mxu0
    %1272 = vst [vmem:[#allocation10] sm:$0xff] %v1266
    %1273 = vst [vmem:[#allocation10 + $0x8] sm:$0xff] %v1270
    // Predicated region
    $region46: #{tpu_custom_call.1} parent=1 // pred_check
      _
    $region47: #{tpu_custom_call.1} parent=1 // pred_check_branch
      %1275 = sbr.rel (0) target = $region49
    $region48: #{tpu_custom_call.1} parent=1 // pred_region
      %1277 = vsyncadd [#allocation4], 0
      %s1278 = sshll.u32 [#allocation10], 4
      %s1279 = int_to_ptr.vmem [resolvable:$true] %s1278
      %s1280 = sshll.u32 %s7, 4
      %s1281 = int_to_ptr.hbm [resolvable:$true] %s1280
      %1286 = dma.vmem_to_hbm [thread:$0]  %s1279, 256, %s1281, [#allocation4], 128, 128, 8
    $region49: #{tpu_custom_call.1} parent=1 // pred_fallthru
      _
    // Predicated region
    $region50: #{tpu_custom_call.1} parent=1 // pred_check
      _
    $region51: #{tpu_custom_call.1} parent=1 // pred_check_branch
      %1288 = sbr.rel (0) target = $region53
    $region52: #{tpu_custom_call.1} parent=1 // pred_region
      %1290 = dma.done [#allocation4], 256
    $region53: #{tpu_custom_call.1} parent=1 // pred_fallthru
      _
    %1291 = vsyncpa [#allocation3], 1
    %1292 = vsyncpa [#allocation6], 1
    %1293 = vsyncpa [#allocation9], 1
    %1294 = vsyncpa [#allocation4], 1

</llo_original>
